<compile_context>
chip_gen: v7x
topology: tpu7x:2x2x1
jax: 0.10.0
libtpu: 0.0.40
codegen_flags: <defaults>
</compile_context>

<pallas_src>
import jax
import jax.numpy as jnp
from jax import lax
from jax.experimental import pallas as pl
from jax.experimental.pallas import tpu as pltpu


def reviewer_kernel(x_ref, wf_ref, b1w2_ref, b2_ref, o_ref, acc_ref):
    # x_ref:    (S, TB)  int32  token ids, batch tile on lanes
    # wf_ref:   (H, TV)  bf16   vocab tile of the fused table (E @ W1)^T
    # b1w2_ref: (H, 2)   f32    [:, 0]=b1, [:, 1]=w2 (packed into one block)
    # b2_ref:   (1, 1)   f32    SMEM scalar
    # o_ref:    (1, TB)  f32    lane-dense output row
    # acc_ref:  (H, TB)  f32    VMEM accumulator across vocab tiles
    k = pl.program_id(1)

    @pl.when(k == 0)
    def _():
        acc_ref[...] = jnp.zeros_like(acc_ref)

    xT = x_ref[...]
    S, TB = xT.shape
    H, TV = wf_ref.shape

    # Bag-of-words counts for this vocab tile: counts[v, b] = #{s : x[b, s] == v0+v}.
    # Accumulate in int32 (exact), cast once to bf16 for the MXU matmul.
    v0 = k * TV
    xs = xT - v0                                                  # shift ids, not iota
    iota_v = lax.broadcasted_iota(jnp.int32, (TV, TB), 0)
    counts = jnp.zeros((TV, TB), dtype=jnp.int32)
    for s in range(S):                                            # S tiny & static
        counts = counts + (xs[s:s + 1, :] == iota_v).astype(jnp.int32)

    # Fused (embedding lookup o sum ∘ Linear(dim,16)) on this vocab tile (bf16 MXU).
    acc_ref[...] += jnp.dot(wf_ref[...], counts.astype(jnp.bfloat16),
                            preferred_element_type=jnp.float32)   # (H, TB)

    @pl.when(k == pl.num_programs(1) - 1)
    def _():
        b1 = b1w2_ref[:, 0:1]
        w2 = b1w2_ref[:, 1:2]
        first = acc_ref[...] * (1.0 / S) + b1                     # 1/S post-matmul
        sig1 = jax.nn.sigmoid(first)
        # Linear(16, 1) on the VPU/XLU: broadcast-mul + sublane reduce.
        third = jnp.sum(sig1 * w2, axis=0, keepdims=True) + b2_ref[0, 0]   # (1, TB)
        # TODO(synk): nn.Dropout(0.2) is identity in eval/inference; training-time
        # stochastic masking (pltpu.prng_seed / prng_random_bits) not implemented.
        o_ref[...] = jax.nn.sigmoid(third)


def make_reviewer_params(emb, w1, b1, w2, b2):
    """Precompute fused weights ONCE (not per forward call).

    mean(E[x]) @ W1 == (bag_of_words(x) @ (E @ W1)) / S, so the (V, D) embedding
    table never enters the per-call path; only the tiny fused (H, V) table does.
    """
    H = w1.shape[1]
    wf_t = jnp.dot(emb, w1, precision=lax.Precision.HIGHEST).T    # (H, V) f32
    wf_t = wf_t.astype(jnp.bfloat16)                              # single bf16 MXU pass
    b1w2 = jnp.concatenate([b1.reshape(H, 1), w2.reshape(H, 1)],
                           axis=1).astype(jnp.float32)            # (H, 2)
    b2_s = b2.reshape(1, 1).astype(jnp.float32)
    return wf_t, b1w2, b2_s


def _pick_batch_tile(B):
    try:
        kind = jax.devices()[0].device_kind.lower()
    except Exception:
        kind = ""
    if B <= 128:
        return -(-B // 8) * 8           # single sublane-multiple tile
    if "v5" in kind:
        tb = 128                        # v5e MXU is 128 wide; 128 already fills N
    else:
        tb = 256                        # v6e/v7x: 256-lane MXU + amortize step overhead
    if "v7" in kind:                    # v7x: 2 TensorCores -> keep >=2 batch tiles
        while tb > 128 and pl.cdiv(B, tb) < 2:
            tb //= 2
    return tb


def reviewer_forward(params, x_ids):
    wf_t, b1w2, b2_s = params
    B, S = x_ids.shape
    H, V = wf_t.shape

    # Batch tiling (batch on lanes -> lane-dense output stores).
    TB = _pick_batch_tile(B)
    GB = pl.cdiv(B, TB)
    B_pad = GB * TB

    # Vocab tiling: full V when small, else 128-multiple chunks as an "arbitrary"
    # reduction axis -> bounded (TV, TB) temps / wf tile regardless of V (v7x VMEM).
    if V <= 2048:
        TV, V_pad, wf_p = V, V, wf_t
    else:
        TV = 2048
        V_pad = pl.cdiv(V, TV) * TV
        wf_p = jnp.pad(wf_t, ((0, 0), (0, V_pad - V)))
    GV = V_pad // TV

    xT = x_ids.T.astype(jnp.int32)                                # (S, B), tiny
    if B_pad != B:
        # Padded lanes use token id 0 (valid row); their outputs are sliced off.
        xT = jnp.pad(xT, ((0, 0), (0, B_pad - B)))

    out_row = pl.pallas_call(
        reviewer_kernel,
        out_shape=jax.ShapeDtypeStruct((1, B_pad), jnp.float32),
        grid=(GB, GV),                                            # reduction axis last
        in_specs=[
            pl.BlockSpec((S, TB), lambda i, k: (0, i)),           # ids per batch tile
            pl.BlockSpec((H, TV), lambda i, k: (0, k)),           # fused-table vocab tile
            pl.BlockSpec((H, 2), lambda i, k: (0, 0)),            # packed b1|w2, resident
            pl.BlockSpec(memory_space=pltpu.MemorySpace.SMEM),    # b2 scalar
        ],
        out_specs=pl.BlockSpec((1, TB), lambda i, k: (0, i)),     # lane-dense row
        scratch_shapes=[pltpu.VMEM((H, TB), jnp.float32)],        # f32 accumulator
        compiler_params=pltpu.CompilerParams(
            dimension_semantics=("parallel", "arbitrary"),
        ),
    )(xT, wf_p, b1w2, b2_s)

    return out_row.reshape(B_pad, 1)[:B]                          # (B, 1)


def _ref_forward(x_ids, emb, w1, b1, w2, b2):
    # pure-JAX f32 reference (eval-mode dropout = identity)
    e = jnp.take(emb, x_ids, axis=0)                              # (B, S, D)
    m = jnp.mean(e, axis=1)                                       # (B, D)
    h = jax.nn.sigmoid(jnp.dot(m, w1, precision=lax.Precision.HIGHEST) + b1[0])
    t = jnp.dot(h, w2, precision=lax.Precision.HIGHEST) + b2[0]   # (B, 1)
    return jax.nn.sigmoid(t)


if __name__ == "__main__":
    vocab, dim = 32, 32
    B, S = 2, 8

    key = jax.random.PRNGKey(0)
    k_x, k_e, k_w1, k_b1, k_w2, k_b2 = jax.random.split(key, 6)

    x_ids = jax.random.randint(k_x, (B, S), 0, vocab, dtype=jnp.int32)
    emb = jax.random.normal(k_e, (vocab, dim), dtype=jnp.float32)
    # Linear(dim, 16): torch weight (16, dim) -> stored transposed (dim, 16)
    w1 = jax.random.normal(k_w1, (dim, 16), dtype=jnp.float32) * 0.1
    b1 = jax.random.normal(k_b1, (1, 16), dtype=jnp.float32) * 0.1
    # Linear(16, 1): torch weight (1, 16) -> stored transposed (16, 1)
    w2 = jax.random.normal(k_w2, (16, 1), dtype=jnp.float32) * 0.1
    b2 = jax.random.normal(k_b2, (1, 1), dtype=jnp.float32) * 0.1

    # Fused weights precomputed once; per-call path only runs the kernel.
    params = make_reviewer_params(emb, w1, b1, w2, b2)

    out = reviewer_forward(params, x_ids)
    out = jax.block_until_ready(out)

    ref = _ref_forward(x_ids, emb, w1, b1, w2, b2)
    assert out.shape == (B, 1)
    # Fused table is bf16 (per review) -> ~1e-3 relative error in pre-sigmoid logits.
    assert jnp.allclose(out, ref, atol=5e-3, rtol=5e-3), (out, ref)

    print("KERNEL_OK")
</pallas_src>

<mosaic_0001>
module attributes {stable_mosaic.version = 11 : i64} {
  func.func @reviewer_kernel(%arg0: i32, %arg1: i32, %arg2: memref<8x8xi32, #tpu.memory_space<vmem>>, %arg3: memref<16x32xbf16, #tpu.memory_space<vmem>>, %arg4: memref<16x2xf32, #tpu.memory_space<vmem>>, %arg5: memref<1x1xf32, #tpu.memory_space<smem>>, %arg6: memref<1x8xf32, #tpu.memory_space<vmem>>, %arg7: memref<16x8xf32, #tpu.memory_space<vmem>>) attributes {dimension_semantics = [#tpu.dimension_semantics<parallel>, #tpu.dimension_semantics<arbitrary>], iteration_bounds = array<i64: 1, 1>, scalar_prefetch = 0 : i64, scratch_operands = 1 : i64, tpu.core_type = #tpu.core_type<tc>, window_params = [{transform_indices = @transform_0, window_bounds = array<i64: 8, 8>}, {transform_indices = @transform_1, window_bounds = array<i64: 16, 32>}, {pipeline_mode = #tpu.pipeline_mode<synchronous>, transform_indices = @transform_2, window_bounds = array<i64: 16, 2>}, {transform_indices = @transform_3, window_bounds = array<i64: 1, 1>}, {transform_indices = @transform_4, window_bounds = array<i64: 1, 8>}]} {
    %c0_i32 = arith.constant 0 : i32
    %0 = arith.cmpi eq, %arg1, %c0_i32 : i32
    %1 = arith.extui %0 : i1 to i32
    %c0_i32_0 = arith.constant 0 : i32
    %2 = arith.cmpi ne, %1, %c0_i32_0 : i32
    scf.if %2 {
      %cst_11 = arith.constant 0.000000e+00 : f32
      %58 = vector.broadcast %cst_11 : f32 to vector<16x8xf32>
      %c0_12 = arith.constant 0 : index
      %c0_13 = arith.constant 0 : index
      %59 = vector.load %arg7[%c0_12, %c0_13] : memref<16x8xf32, #tpu.memory_space<vmem>>, vector<16x8xf32>
      tpu.vector_store %arg7[%c0_12, %c0_13], %58 {strides = array<i32>} : memref<16x8xf32, #tpu.memory_space<vmem>>, vector<16x8xf32>,
    } else {
    }
    %c0 = arith.constant 0 : index
    %c0_1 = arith.constant 0 : index
    %3 = vector.load %arg2[%c0, %c0_1] : memref<8x8xi32, #tpu.memory_space<vmem>>, vector<8x8xi32>
    %c32_i32 = arith.constant 32 : i32
    %4 = arith.muli %arg1, %c32_i32 : i32
    %5 = vector.broadcast %4 : i32 to vector<8x8xi32>
    %6 = arith.subi %3, %5 : vector<8x8xi32>
    %7 = tpu.iota {dimensions = array<i32: 0>} : vector<32x8xi32>
    %c0_i32_2 = arith.constant 0 : i32
    %8 = vector.broadcast %c0_i32_2 : i32 to vector<32x8xi32>
    %9 = vector.extract_strided_slice %6 {offsets = [0, 0], sizes = [1, 8], strides = [1, 1]} : vector<8x8xi32> to vector<1x8xi32>
    %10 = vector.broadcast %9 : vector<1x8xi32> to vector<32x8xi32>
    %11 = arith.cmpi eq, %10, %7 : vector<32x8xi32>
    %12 = arith.extui %11 : vector<32x8xi1> to vector<32x8xi32>
    %13 = arith.addi %8, %12 : vector<32x8xi32>
    %14 = vector.extract_strided_slice %6 {offsets = [1, 0], sizes = [1, 8], strides = [1, 1]} : vector<8x8xi32> to vector<1x8xi32>
    %15 = vector.broadcast %14 : vector<1x8xi32> to vector<32x8xi32>
    %16 = arith.cmpi eq, %15, %7 : vector<32x8xi32>
    %17 = arith.extui %16 : vector<32x8xi1> to vector<32x8xi32>
    %18 = arith.addi %13, %17 : vector<32x8xi32>
    %19 = vector.extract_strided_slice %6 {offsets = [2, 0], sizes = [1, 8], strides = [1, 1]} : vector<8x8xi32> to vector<1x8xi32>
    %20 = vector.broadcast %19 : vector<1x8xi32> to vector<32x8xi32>
    %21 = arith.cmpi eq, %20, %7 : vector<32x8xi32>
    %22 = arith.extui %21 : vector<32x8xi1> to vector<32x8xi32>
    %23 = arith.addi %18, %22 : vector<32x8xi32>
    %24 = vector.extract_strided_slice %6 {offsets = [3, 0], sizes = [1, 8], strides = [1, 1]} : vector<8x8xi32> to vector<1x8xi32>
    %25 = vector.broadcast %24 : vector<1x8xi32> to vector<32x8xi32>
    %26 = arith.cmpi eq, %25, %7 : vector<32x8xi32>
    %27 = arith.extui %26 : vector<32x8xi1> to vector<32x8xi32>
    %28 = arith.addi %23, %27 : vector<32x8xi32>
    %29 = vector.extract_strided_slice %6 {offsets = [4, 0], sizes = [1, 8], strides = [1, 1]} : vector<8x8xi32> to vector<1x8xi32>
    %30 = vector.broadcast %29 : vector<1x8xi32> to vector<32x8xi32>
    %31 = arith.cmpi eq, %30, %7 : vector<32x8xi32>
    %32 = arith.extui %31 : vector<32x8xi1> to vector<32x8xi32>
    %33 = arith.addi %28, %32 : vector<32x8xi32>
    %34 = vector.extract_strided_slice %6 {offsets = [5, 0], sizes = [1, 8], strides = [1, 1]} : vector<8x8xi32> to vector<1x8xi32>
    %35 = vector.broadcast %34 : vector<1x8xi32> to vector<32x8xi32>
    %36 = arith.cmpi eq, %35, %7 : vector<32x8xi32>
    %37 = arith.extui %36 : vector<32x8xi1> to vector<32x8xi32>
    %38 = arith.addi %33, %37 : vector<32x8xi32>
    %39 = vector.extract_strided_slice %6 {offsets = [6, 0], sizes = [1, 8], strides = [1, 1]} : vector<8x8xi32> to vector<1x8xi32>
    %40 = vector.broadcast %39 : vector<1x8xi32> to vector<32x8xi32>
    %41 = arith.cmpi eq, %40, %7 : vector<32x8xi32>
    %42 = arith.extui %41 : vector<32x8xi1> to vector<32x8xi32>
    %43 = arith.addi %38, %42 : vector<32x8xi32>
    %44 = vector.extract_strided_slice %6 {offsets = [7, 0], sizes = [1, 8], strides = [1, 1]} : vector<8x8xi32> to vector<1x8xi32>
    %45 = vector.broadcast %44 : vector<1x8xi32> to vector<32x8xi32>
    %46 = arith.cmpi eq, %45, %7 : vector<32x8xi32>
    %47 = arith.extui %46 : vector<32x8xi1> to vector<32x8xi32>
    %48 = arith.addi %43, %47 : vector<32x8xi32>
    %c0_3 = arith.constant 0 : index
    %c0_4 = arith.constant 0 : index
    %49 = vector.load %arg7[%c0_3, %c0_4] : memref<16x8xf32, #tpu.memory_space<vmem>>, vector<16x8xf32>
    %c0_5 = arith.constant 0 : index
    %c0_6 = arith.constant 0 : index
    %50 = vector.load %arg3[%c0_5, %c0_6] : memref<16x32xbf16, #tpu.memory_space<vmem>>, vector<16x32xbf16>
    %51 = arith.sitofp %48 : vector<32x8xi32> to vector<32x8xbf16>
    %cst = arith.constant dense<0.000000e+00> : vector<16x8xf32>
    %52 = tpu.matmul %50, %51, %cst {dimension_numbers = #tpu.dot_dimension_numbers<[1], [0], [0], [1], [0, 0, 1, 1], [], []>} : vector<16x32xbf16>, vector<32x8xbf16>, vector<16x8xf32> -> vector<16x8xf32>
    %53 = arith.addf %49, %52 : vector<16x8xf32>
    %c0_7 = arith.constant 0 : index
    %c0_8 = arith.constant 0 : index
    %54 = vector.load %arg7[%c0_7, %c0_8] : memref<16x8xf32, #tpu.memory_space<vmem>>, vector<16x8xf32>
    tpu.vector_store %arg7[%c0_7, %c0_8], %53 {strides = array<i32>} : memref<16x8xf32, #tpu.memory_space<vmem>>, vector<16x8xf32>,
    %c0_i32_9 = arith.constant 0 : i32
    %55 = arith.cmpi eq, %arg1, %c0_i32_9 : i32
    %56 = arith.extui %55 : i1 to i32
    %c0_i32_10 = arith.constant 0 : i32
    %57 = arith.cmpi ne, %56, %c0_i32_10 : i32
    scf.if %57 {
      %c0_11 = arith.constant 0 : index
      %c0_12 = arith.constant 0 : index
      %58 = vector.load %arg4[%c0_11, %c0_12] : memref<16x2xf32, #tpu.memory_space<vmem>>, vector<16x1xf32>
      %c0_13 = arith.constant 0 : index
      %c1 = arith.constant 1 : index
      %59 = vector.load %arg4[%c0_13, %c1] : memref<16x2xf32, #tpu.memory_space<vmem>>, vector<16x1xf32>
      %c0_14 = arith.constant 0 : index
      %c0_15 = arith.constant 0 : index
      %60 = vector.load %arg7[%c0_14, %c0_15] : memref<16x8xf32, #tpu.memory_space<vmem>>, vector<16x8xf32>
      %cst_16 = arith.constant 1.250000e-01 : f32
      %61 = vector.broadcast %cst_16 : f32 to vector<16x8xf32>
      %62 = arith.mulf %60, %61 : vector<16x8xf32>
      %63 = vector.broadcast %58 : vector<16x1xf32> to vector<16x8xf32>
      %64 = arith.addf %62, %63 : vector<16x8xf32>
      %65 = arith.negf %64 : vector<16x8xf32>
      %66 = math.exp %65 : vector<16x8xf32>
      %cst_17 = arith.constant 1.000000e+00 : f32
      %67 = vector.broadcast %cst_17 : f32 to vector<16x8xf32>
      %68 = arith.addf %67, %66 : vector<16x8xf32>
      %69 = arith.divf %67, %68 : vector<16x8xf32>
      %70 = vector.broadcast %59 : vector<16x1xf32> to vector<16x8xf32>
      %71 = arith.mulf %69, %70 : vector<16x8xf32>
      %cst_18 = arith.constant dense<0.000000e+00> : vector<8xf32>
      %72 = vector.multi_reduction <add>, %71, %cst_18 [0] : vector<16x8xf32> to vector<8xf32>
      %73 = vector.shape_cast %72 : vector<8xf32> to vector<1x8xf32>
      %c0_19 = arith.constant 0 : index
      %c0_20 = arith.constant 0 : index
      %74 = memref.load %arg5[%c0_19, %c0_20] : memref<1x1xf32, #tpu.memory_space<smem>>
      %75 = vector.broadcast %74 : f32 to vector<1x8xf32>
      %76 = arith.addf %73, %75 : vector<1x8xf32>
      %77 = arith.negf %76 : vector<1x8xf32>
      %78 = math.exp %77 : vector<1x8xf32>
      %cst_21 = arith.constant 1.000000e+00 : f32
      %79 = vector.broadcast %cst_21 : f32 to vector<1x8xf32>
      %80 = arith.addf %79, %78 : vector<1x8xf32>
      %81 = arith.divf %79, %80 : vector<1x8xf32>
      %c0_22 = arith.constant 0 : index
      %c0_23 = arith.constant 0 : index
      %82 = vector.load %arg6[%c0_22, %c0_23] : memref<1x8xf32, #tpu.memory_space<vmem>>, vector<1x8xf32>
      tpu.vector_store %arg6[%c0_22, %c0_23], %81 {strides = array<i32>} : memref<1x8xf32, #tpu.memory_space<vmem>>, vector<1x8xf32>,
    } else {
    }
    return
  }
  func.func @transform_0(%arg0: i32, %arg1: i32) -> (i32, i32) {
    %c0_i32 = arith.constant 0 : i32
    %c0_i32_0 = arith.constant 0 : i32
    return %c0_i32, %arg0 : i32, i32
  }
  func.func @transform_1(%arg0: i32, %arg1: i32) -> (i32, i32) {
    %c0_i32 = arith.constant 0 : i32
    %c0_i32_0 = arith.constant 0 : i32
    return %c0_i32, %arg1 : i32, i32
  }
  func.func @transform_2(%arg0: i32, %arg1: i32) -> (i32, i32) {
    %c0_i32 = arith.constant 0 : i32
    %c0_i32_0 = arith.constant 0 : i32
    %c0_i32_1 = arith.constant 0 : i32
    return %c0_i32, %c0_i32_0 : i32, i32
  }
  func.func @transform_3(%arg0: i32, %arg1: i32) -> (i32, i32) {
    %c0_i32 = arith.constant 0 : i32
    %c0_i32_0 = arith.constant 0 : i32
    %c0_i32_1 = arith.constant 0 : i32
    return %c0_i32, %c0_i32_0 : i32, i32
  }
  func.func @transform_4(%arg0: i32, %arg1: i32) -> (i32, i32) {
    %c0_i32 = arith.constant 0 : i32
    %c0_i32_0 = arith.constant 0 : i32
    return %c0_i32, %arg0 : i32, i32
  }
}

</mosaic_0001>

<llo_original>
// kernel: tpu_custom_call.1
$region0: #{tpu_custom_call.1}
  #allocation0 [shape = 'u32[]', space=smem, size = 0x4, offset = 0x4, fixed_abs, tag = 'smem constant byte address 0x4 - core index']
  #allocation1 [shape = 'u32[144,128]{1,0:T(1,128)}', space=vmem, size = 0x12000, scoped, tag = 'internal scratch']
  #allocation2 [shape = 'f32[16,8]{1,0:T(8,128)}', space=vmem, size = 0x2000, scoped, tag = 'scratch operand']
  #allocation3 [shape = 'f32[1,1]{1,0:T(1,128)S(6)}', space=smem, size = 0x200, scoped, tag = 'scoped memory for tpu_custom_call.1']
  %s0 = inlined_call_operand.vmem [shape: s32[8,8], index: 0, kind: input, shape index: {}]
  %s1 = inlined_call_operand.vmem [shape: bf16[16,32], index: 1, kind: input, shape index: {}]
  %s2 = inlined_call_operand.vmem [shape: f32[16,2], index: 2, kind: input, shape index: {}]
  %s3 = inlined_call_operand.<no memory space> [shape: f32[1,1], index: 3, kind: input, shape index: {}]
  %s4 = inlined_call_operand.hbm [shape: f32[1,8], index: 4, kind: output, shape index: {}]
  %s5 = sld [smem:[#allocation0]]
  $region34: #{tpu_custom_call.1} parent=0
    _
  %s7 = ssub.s32 1, %s5
  %s8 = scalar_select 0, %s7, %s5
  %9 = sst [smem:[#allocation3]] %s3
  $region1: #{tpu_custom_call.1} parent=0
    #allocation4 [shape = 'u8[512]{0}', space=vmem, size = 0x400, scoped, tag = 'output window, operand 0, single buffered']
    #allocation5 [shape = 's32[1]{0}', space=sflag, size = 0x4, scoped, tag = 'scoped memory for tpu_custom_call.1']
    %10 = vsyncpa [#allocation5], 0
    // Predicated region
    $region2: #{tpu_custom_call.1} parent=1 // pred_check
      _
    $region3: #{tpu_custom_call.1} parent=1 // pred_check_branch
      %12 = sbr.rel (0) target = $region5
    $region4: #{tpu_custom_call.1} parent=1 // pred_region
      _
    $region5: #{tpu_custom_call.1} parent=1 // pred_fallthru
      _
    // Predicated region
    $region6: #{tpu_custom_call.1} parent=1 // pred_check
      _
    $region7: #{tpu_custom_call.1} parent=1 // pred_check_branch
      %14 = sbr.rel (0) target = $region9
    $region8: #{tpu_custom_call.1} parent=1 // pred_region
      _
    $region9: #{tpu_custom_call.1} parent=1 // pred_fallthru
      _
    // Predicated region
    $region10: #{tpu_custom_call.1} parent=1 // pred_check
      _
    $region11: #{tpu_custom_call.1} parent=1 // pred_check_branch
      %16 = sbr.rel (0) target = $region13
    $region12: #{tpu_custom_call.1} parent=1 // pred_region
      _
    $region13: #{tpu_custom_call.1} parent=1 // pred_fallthru
      _
    // Predicated region
    $region14: #{tpu_custom_call.1} parent=1 // pred_check
      _
    $region15: #{tpu_custom_call.1} parent=1 // pred_check_branch
      %18 = sbr.rel (0) target = $region17
    $region16: #{tpu_custom_call.1} parent=1 // pred_region
      _
    $region17: #{tpu_custom_call.1} parent=1 // pred_fallthru
      _
    %p20 = scmp.eq.s32.totalorder 0, 0
    // Predicated region
    $region18: #{tpu_custom_call.1} parent=1 // pred_check
      %p21 = pneg %p20
    $region19: #{tpu_custom_call.1} parent=1 // pred_check_branch
      %23 = sbr.rel (%p21) target = $region21
    $region20: #{tpu_custom_call.1} parent=1 // pred_region
      %vm24 = vcmask 64512
      %25 = vst.msk [vmem:[#allocation2] sm:$0xff] %vm24, 0.0
      %26 = vst.msk [vmem:[#allocation2 + $0x8] sm:$0xff] %vm24, 0.0
    $region21: #{tpu_custom_call.1} parent=1 // pred_fallthru
      _
    %v27 = vld [vmem:[%s0] sm:$0xff]
    %s28 = smul.u32 0, 32
    %v29 = vstv %s28
    %v30 = vsub.s32 %v27, %v29
    %v31 = vlaneseq
    %v32 = vshrl.u32 %v31, 7
    %v33 = vadd.s32 %v32, 8
    %v34 = vadd.s32 %v32, 16
    %v35 = vadd.s32 %v32, 24
    %v36 = vlaneseq
    %v37 = vshrl.u32 %v36, 7
    %v38 = vsub.s32 0, %v37
    %v39 = vrot.slane %v30, %v38
    %vm40 = vcmp.eq.s32.totalorder %v39, %v32
    %vm41 = vcmp.eq.s32.totalorder %v39, %v33
    %vm42 = vcmp.eq.s32.totalorder %v39, %v34
    %vm43 = vcmp.eq.s32.totalorder %v39, %v35
    %v44 = vsel %vm40, 1, 0
    %v45 = vsel %vm41, 1, 0
    %v46 = vsel %vm42, 1, 0
    %v47 = vsel %vm43, 1, 0
    %v48 = vlaneseq
    %v49 = vshrl.u32 %v48, 7
    %v50 = vsub.s32 1, %v49
    %v51 = vrot.slane %v30, %v50
    %vm52 = vcmp.eq.s32.totalorder %v51, %v32
    %vm53 = vcmp.eq.s32.totalorder %v51, %v33
    %vm54 = vcmp.eq.s32.totalorder %v51, %v34
    %vm55 = vcmp.eq.s32.totalorder %v51, %v35
    %v56 = vsel %vm52, 1, 0
    %v57 = vsel %vm53, 1, 0
    %v58 = vsel %vm54, 1, 0
    %v59 = vsel %vm55, 1, 0
    %v60 = vadd.s32 %v44, %v56
    %v61 = vadd.s32 %v45, %v57
    %v62 = vadd.s32 %v46, %v58
    %v63 = vadd.s32 %v47, %v59
    %v64 = vlaneseq
    %v65 = vshrl.u32 %v64, 7
    %v66 = vsub.s32 2, %v65
    %v67 = vrot.slane %v30, %v66
    %vm68 = vcmp.eq.s32.totalorder %v67, %v32
    %vm69 = vcmp.eq.s32.totalorder %v67, %v33
    %vm70 = vcmp.eq.s32.totalorder %v67, %v34
    %vm71 = vcmp.eq.s32.totalorder %v67, %v35
    %v72 = vsel %vm68, 1, 0
    %v73 = vsel %vm69, 1, 0
    %v74 = vsel %vm70, 1, 0
    %v75 = vsel %vm71, 1, 0
    %v76 = vadd.s32 %v60, %v72
    %v77 = vadd.s32 %v61, %v73
    %v78 = vadd.s32 %v62, %v74
    %v79 = vadd.s32 %v63, %v75
    %v80 = vlaneseq
    %v81 = vshrl.u32 %v80, 7
    %v82 = vsub.s32 3, %v81
    %v83 = vrot.slane %v30, %v82
    %vm84 = vcmp.eq.s32.totalorder %v83, %v32
    %vm85 = vcmp.eq.s32.totalorder %v83, %v33
    %vm86 = vcmp.eq.s32.totalorder %v83, %v34
    %vm87 = vcmp.eq.s32.totalorder %v83, %v35
    %v88 = vsel %vm84, 1, 0
    %v89 = vsel %vm85, 1, 0
    %v90 = vsel %vm86, 1, 0
    %v91 = vsel %vm87, 1, 0
    %v92 = vadd.s32 %v76, %v88
    %v93 = vadd.s32 %v77, %v89
    %v94 = vadd.s32 %v78, %v90
    %v95 = vadd.s32 %v79, %v91
    %v96 = vlaneseq
    %v97 = vshrl.u32 %v96, 7
    %v98 = vsub.s32 4, %v97
    %v99 = vrot.slane %v30, %v98
    %vm100 = vcmp.eq.s32.totalorder %v99, %v32
    %vm101 = vcmp.eq.s32.totalorder %v99, %v33
    %vm102 = vcmp.eq.s32.totalorder %v99, %v34
    %vm103 = vcmp.eq.s32.totalorder %v99, %v35
    %v104 = vsel %vm100, 1, 0
    %v105 = vsel %vm101, 1, 0
    %v106 = vsel %vm102, 1, 0
    %v107 = vsel %vm103, 1, 0
    %v108 = vadd.s32 %v92, %v104
    %v109 = vadd.s32 %v93, %v105
    %v110 = vadd.s32 %v94, %v106
    %v111 = vadd.s32 %v95, %v107
    %v112 = vlaneseq
    %v113 = vshrl.u32 %v112, 7
    %v114 = vsub.s32 5, %v113
    %v115 = vrot.slane %v30, %v114
    %vm116 = vcmp.eq.s32.totalorder %v115, %v32
    %vm117 = vcmp.eq.s32.totalorder %v115, %v33
    %vm118 = vcmp.eq.s32.totalorder %v115, %v34
    %vm119 = vcmp.eq.s32.totalorder %v115, %v35
    %v120 = vsel %vm116, 1, 0
    %v121 = vsel %vm117, 1, 0
    %v122 = vsel %vm118, 1, 0
    %v123 = vsel %vm119, 1, 0
    %v124 = vadd.s32 %v108, %v120
    %v125 = vadd.s32 %v109, %v121
    %v126 = vadd.s32 %v110, %v122
    %v127 = vadd.s32 %v111, %v123
    %v128 = vlaneseq
    %v129 = vshrl.u32 %v128, 7
    %v130 = vsub.s32 6, %v129
    %v131 = vrot.slane %v30, %v130
    %vm132 = vcmp.eq.s32.totalorder %v131, %v32
    %vm133 = vcmp.eq.s32.totalorder %v131, %v33
    %vm134 = vcmp.eq.s32.totalorder %v131, %v34
    %vm135 = vcmp.eq.s32.totalorder %v131, %v35
    %v136 = vsel %vm132, 1, 0
    %v137 = vsel %vm133, 1, 0
    %v138 = vsel %vm134, 1, 0
    %v139 = vsel %vm135, 1, 0
    %v140 = vadd.s32 %v124, %v136
    %v141 = vadd.s32 %v125, %v137
    %v142 = vadd.s32 %v126, %v138
    %v143 = vadd.s32 %v127, %v139
    %v144 = vlaneseq
    %v145 = vshrl.u32 %v144, 7
    %v146 = vsub.s32 7, %v145
    %v147 = vrot.slane %v30, %v146
    %vm148 = vcmp.eq.s32.totalorder %v147, %v32
    %vm149 = vcmp.eq.s32.totalorder %v147, %v33
    %vm150 = vcmp.eq.s32.totalorder %v147, %v34
    %vm151 = vcmp.eq.s32.totalorder %v147, %v35
    %v152 = vsel %vm148, 1, 0
    %v153 = vsel %vm149, 1, 0
    %v154 = vsel %vm150, 1, 0
    %v155 = vsel %vm151, 1, 0
    %v156 = vadd.s32 %v140, %v152
    %v157 = vadd.s32 %v141, %v153
    %v158 = vadd.s32 %v142, %v154
    %v159 = vadd.s32 %v143, %v155
    %v160 = vld [vmem:[#allocation2] sm:$0xff]
    %v161 = vld [vmem:[#allocation2 + $0x8] sm:$0xff]
    %v162 = vld [vmem:[%s1] sm:$0xf]
    %v163 = vld [vmem:[%s1 + $0x4] sm:$0xf]
    %v164 = vcvt.s32.f32 %v156
    %v165 = vcvt.s32.f32 %v157
    %v166 = vcvt.s32.f32 %v158
    %v167 = vcvt.s32.f32 %v159
    %v168 = vpack.c.bf16 %v165, %v164
    %v169 = vpack.c.bf16 %v167, %v166
    %v172 = vunpack.c.l.b16 %v162
    %v173 = vunpack.c.l.b16 %v163
    %v174 = vpack.c.b16 %v173, %v172
    %vm175 = vcmask 261120
    %v177 = vsel %vm175, %v174, 0
    %179 = vmatprep.subr.bf16.mxu0 0
    %180 = vmatpush1.bf16.msra.mxu0 %v168
    %181 = vmatprep.subr.bf16.mxu0 0
    %182 = vmatpush1.bf16.msra.mxu0 %v169
    %183 = vmatprep.subr.bf16.mxu0 0
    %184 = vmatpush1.bf16.msra.mxu0 0
    %185 = vmatprep.subr.bf16.mxu0 0
    %186 = vmatpush1.bf16.msra.mxu0 0
    %187 = vmatprep.subr.bf16.mxu0 0
    %188 = vmatpush1.bf16.msra.mxu0 0
    %189 = vmatprep.subr.bf16.mxu0 0
    %190 = vmatpush1.bf16.msra.mxu0 0
    %191 = vmatprep.subr.bf16.mxu0 0
    %192 = vmatpush1.bf16.msra.mxu0 0
    %193 = vmatprep.subr.bf16.mxu0 0
    %194 = vmatpush1.bf16.msra.mxu0 0
    %195 = vmatprep.subr.bf16.mxu0 0
    %196 = vmatpush1.bf16.msra.mxu0 0
    %197 = vmatprep.subr.bf16.mxu0 0
    %198 = vmatpush1.bf16.msra.mxu0 0
    %199 = vmatprep.subr.bf16.mxu0 0
    %200 = vmatpush1.bf16.msra.mxu0 0
    %201 = vmatprep.subr.bf16.mxu0 0
    %202 = vmatpush1.bf16.msra.mxu0 0
    %203 = vmatprep.subr.bf16.mxu0 0
    %204 = vmatpush1.bf16.msra.mxu0 0
    %205 = vmatprep.subr.bf16.mxu0 0
    %206 = vmatpush1.bf16.msra.mxu0 0
    %207 = vmatprep.subr.bf16.mxu0 0
    %208 = vmatpush1.bf16.msra.mxu0 0
    %209 = vmatprep.subr.bf16.mxu0 0
    %210 = vmatpush1.bf16.msra.mxu0 0
    %211 = vmatprep.mubr.bf16.mxu0 0
    %212 = vmatmul.mubr.bf16.gmra.mrb[0].mxu0 %v177
    %v213 = vpop.f32.mrb[0].mxu0
    %v214 = vadd.f32 0.0, %v213
    %v215 = vpop.f32.mrb[0].mxu0
    %v216 = vpop.f32.mrb[0].mxu0
    %v217 = vadd.f32 0.0, %v216
    %v218 = vpop.f32.mrb[0].mxu0
    %219 = vdwg.mxu0
    %v220 = vadd.f32 %v160, %v214
    %v221 = vadd.f32 %v161, %v217
    %vm222 = vcmask 64512
    %223 = vst.msk [vmem:[#allocation2] sm:$0xff] %vm222, %v220
    %224 = vst.msk [vmem:[#allocation2 + $0x8] sm:$0xff] %vm222, %v221
    // Predicated region
    $region22: #{tpu_custom_call.1} parent=1 // pred_check
      %p225 = pneg %p20
    $region23: #{tpu_custom_call.1} parent=1 // pred_check_branch
      %227 = sbr.rel (%p225) target = $region25
    $region24: #{tpu_custom_call.1} parent=1 // pred_region
      %v228 = vld [vmem:[%s2] sm:$0xff]
      %v229 = vld [vmem:[%s2 + $0x8] sm:$0xff]
      %v230 = vld [vmem:[#allocation2] sm:$0xff]
      %v231 = vld [vmem:[#allocation2 + $0x8] sm:$0xff]
      %v232 = vmul.f32 %v230, 0.125
      %v233 = vmul.f32 %v231, 0.125
      %235 = vset.pattern.permute.xlu0 0
      %236 = vperm.xlu0 %235, %v228
      %v237 = vpop.permute.xlu0 %236
      %240 = vset.pattern.permute.xlu0 0
      %241 = vperm.xlu0 %240, %v229
      %v242 = vpop.permute.xlu0 %241
      %v244 = vadd.f32 %v232, %v237
      %v245 = vadd.f32 %v233, %v242
      %v246 = vxor.u32 %v244, 2147483648
      %v247 = vxor.u32 %v245, 2147483648
      %v248 = vmul.f32 %v246, 1.442695
      %v249 = vpow.pop %v248
      %v250 = vmul.f32 %v247, 1.442695
      %v251 = vpow.pop %v250
      %v252 = vadd.f32 %v249, 1.0
      %v253 = vadd.f32 %v251, 1.0
      %v254 = vrcp.pop %v252
      %v255 = vmul.f32 1.0, %v254
      %v256 = vrcp.pop %v253
      %v257 = vmul.f32 1.0, %v256
      %258 = vset.pattern.permute.xlu0 1
      %259 = vperm.xlu0 %258, %v228
      %v260 = vpop.permute.xlu0 %259
      %262 = vset.pattern.permute.xlu0 1
      %263 = vperm.xlu0 %262, %v229
      %v264 = vpop.permute.xlu0 %263
      %v266 = vmul.f32 %v255, %v260
      %v267 = vmul.f32 %v257, %v264
      %v268 = vsel %vm222, %v266, 0.0
      %v269 = vsel %vm222, %v267, 0.0
      %v270 = vadd.f32 %v268, %v269
      %v271 = vrot.slane %v270, 4
      %v272 = vadd.f32 %v270, %v271
      %v273 = vrot.slane %v272, 2
      %v274 = vadd.f32 %v272, %v273
      %v275 = vrot.slane %v274, 1
      %v276 = vadd.f32 %v274, %v275
      %s277 = sld [smem:[#allocation3]]
      %v278 = vstv %s277
      %v279 = vadd.f32 %v276, %v278
      %v280 = vxor.u32 %v279, 2147483648
      %v281 = vmul.f32 %v280, 1.442695
      %v282 = vpow.pop %v281
      %v283 = vadd.f32 %v282, 1.0
      %v284 = vrcp.pop %v283
      %v285 = vmul.f32 1.0, %v284
      %vm286 = vcmask 57344
      %287 = vst.msk [vmem:[#allocation4] sm:$0x1] %vm286, %v285
    $region25: #{tpu_custom_call.1} parent=1 // pred_fallthru
      _
    // Predicated region
    $region26: #{tpu_custom_call.1} parent=1 // pred_check
      _
    $region27: #{tpu_custom_call.1} parent=1 // pred_check_branch
      %289 = sbr.rel (0) target = $region29
    $region28: #{tpu_custom_call.1} parent=1 // pred_region
      %s291 = ssub.s32 16, 16
      %292 = vsyncadd [#allocation5], %s291
      %s294 = sshll.u32 [#allocation4], 4
      %s295 = int_to_ptr.vmem [resolvable:$true] %s294
      %297 = dma.vmem_to_hbm [thread:$0]  %s295, 16, %s4, [#allocation5]
    $region29: #{tpu_custom_call.1} parent=1 // pred_fallthru
      _
    // Predicated region
    $region30: #{tpu_custom_call.1} parent=1 // pred_check
      _
    $region31: #{tpu_custom_call.1} parent=1 // pred_check_branch
      %299 = sbr.rel (0) target = $region33
    $region32: #{tpu_custom_call.1} parent=1 // pred_region
      %300 = dma.done [#allocation5], 16
    $region33: #{tpu_custom_call.1} parent=1 // pred_fallthru
      _
    %301 = vsyncpa [#allocation5], 1

</llo_original>
